<compile_context>
chip_gen: v6e
topology: v6e:2x2x1
jax: 0.10.0
libtpu: 0.0.40
codegen_flags: <defaults>
</compile_context>

<pallas_src>
import jax
import jax.numpy as jnp
from jax.experimental import pallas as pl
from jax.experimental.pallas import tpu as pltpu

LANE = 128
SUBLANE = 8
R_PAD = 128          # lane-padded LoRA rank (zero columns are free on the MXU)
MAX_TM = 512         # prefill M tile cap (fewer weight re-streams on v5e/v6e)
MAX_TN = 1024        # weight tile caps: ~1-4 MiB tiles amortise the ~0.35us/step overhead
MAX_TK = 1024


def _round_up(x, m):
    return ((x + m - 1) // m) * m


def _pick_tile(dim_pad, cap, step):
    """Largest multiple of `step` that divides `dim_pad` and is <= cap (fallback: step)."""
    best = step
    t = step
    while t <= min(dim_pad, cap):
        if dim_pad % t == 0:
            best = t
        t += step
    return best


# ----------------------------------------------------------------------------- kernel
def lora_linear_kernel(x_ref, wt_ref, b_ref, mid_ref, bt_ref, o_ref, acc_ref):
    k = pl.program_id(2)

    @pl.when(k == 0)
    def _init():
        # Fold the bias into the accumulator on the (slack) init step.
        acc_ref[...] = jnp.broadcast_to(b_ref[...].astype(jnp.float32), acc_ref.shape)

    acc_ref[...] += jnp.dot(x_ref[...], wt_ref[...],
                            preferred_element_type=jnp.float32)        # base: (tm, tn)

    @pl.when(k == pl.num_programs(2) - 1)
    def _finalize():
        # Rank matmul: native-dtype MXU matmul, f32 accumulation.
        lora = jnp.dot(mid_ref[...], bt_ref[...],
                       preferred_element_type=jnp.float32)             # (tm, tn)
        o_ref[...] = (acc_ref[...] + lora).astype(o_ref.dtype)


# ------------------------------------------------------------------ one-time weight prep
def lora_prepare(w, b, a, bm):
    """One-time (load-time) prep.  PyTorch layouts:
       w: (out, in), b: (out,), a: (rank, in), bm: (out, rank)."""
    N, K = w.shape
    r = a.shape[0]
    assert b.shape == (N,) and a.shape == (r, K) and bm.shape == (N, r)
    N_pad = _round_up(N, LANE)
    K_pad = _round_up(K, LANE)
    w_t = jnp.zeros((K_pad, N_pad), w.dtype).at[:K, :N].set(w.T)
    bias = jnp.zeros((1, N_pad), b.dtype).at[0, :N].set(b)
    a_t = jnp.zeros((K_pad, R_PAD), a.dtype).at[:K, :r].set(a.T)
    b_t = jnp.zeros((R_PAD, N_pad), bm.dtype).at[:r, :N].set(bm.T)
    return dict(w_t=w_t, bias=bias, a_t=a_t, b_t=b_t,
                out_features=N, in_features=K)


# ------------------------------------------------------------------------------ forward
def lora_linear_forward(x, params):
    w_t, bias = params["w_t"], params["bias"]
    a_t, b_t = params["a_t"], params["b_t"]
    N, K = params["out_features"], params["in_features"]
    K_pad, N_pad = w_t.shape

    M = x.shape[0]
    assert x.shape[1] == K

    # Tile selection: multiples of 128 that evenly divide the 128-padded dims.
    tn = _pick_tile(N_pad, MAX_TN, LANE)
    tk = _pick_tile(K_pad, MAX_TK, LANE)

    m8 = _round_up(M, SUBLANE)
    if m8 <= MAX_TM:            # decode / small-batch: single M tile, no M grid axis work
        tm, M_pad = m8, m8
    else:                       # prefill: big M tile -> fewest weight re-streams
        tm = MAX_TM
        M_pad = _round_up(M, tm)

    # Pad x only where the edges are actually ragged.
    if (M_pad, K_pad) != (M, K):
        x_p = jnp.pad(x, ((0, M_pad - M), (0, K_pad - K)))
    else:
        x_p = x

    # LoRA mid product hoisted out of the kernel: tiny (M_pad, 128) matmul, done once.
    mid = jnp.dot(x_p, a_t, precision=jax.lax.Precision.HIGHEST,
                  preferred_element_type=jnp.float32).astype(b_t.dtype)

    grid = (M_pad // tm, N_pad // tn, K_pad // tk)

    itemsize = max(jnp.dtype(x.dtype).itemsize, jnp.dtype(w_t.dtype).itemsize)
    flops = 2 * M_pad * N_pad * K_pad + 2 * M_pad * N_pad * R_PAD
    bytes_accessed = ((x_p.size + w_t.size + bias.size + mid.size + b_t.size) * itemsize
                      + M_pad * N_pad * itemsize)

    # Double-buffered tile footprint (inputs + output) + f32 accumulator scratch.
    footprint = (2 * (tm * tk + tk * tn + tn + tm * R_PAD + R_PAD * tn) * itemsize
                 + 2 * tm * tn * itemsize
                 + tm * tn * 4)
    try:
        vmem_cap = int(pltpu.get_tpu_info().vmem_capacity_bytes)
    except Exception:
        vmem_cap = 64 << 20     # v7x lower bound
    vmem_limit = int(min(max(2 * footprint + (4 << 20), 16 << 20), vmem_cap - (8 << 20)))
    vmem_limit = max(vmem_limit, int(footprint + (2 << 20)))

    out = pl.pallas_call(
        lora_linear_kernel,
        out_shape=jax.ShapeDtypeStruct((M_pad, N_pad), x.dtype),
        grid_spec=pltpu.PrefetchScalarGridSpec(
            num_scalar_prefetch=0,
            grid=grid,
            in_specs=[
                pl.BlockSpec((tm, tk), lambda i, j, k: (i, k)),        # x
                pl.BlockSpec((tk, tn), lambda i, j, k: (k, j)),        # W_t (streamed)
                pl.BlockSpec((1, tn), lambda i, j, k: (0, j)),         # bias
                pl.BlockSpec((tm, R_PAD), lambda i, j, k: (i, 0)),     # mid = x @ A^T
                pl.BlockSpec((R_PAD, tn), lambda i, j, k: (0, j)),     # B_t (tiny)
            ],
            out_specs=pl.BlockSpec((tm, tn), lambda i, j, k: (i, j)),
            scratch_shapes=[
                pltpu.VMEM((tm, tn), jnp.float32),                     # f32 accumulator
            ],
        ),
        compiler_params=pltpu.CompilerParams(
            dimension_semantics=("parallel", "parallel", "arbitrary"),
            vmem_limit_bytes=vmem_limit),
        cost_estimate=pl.CostEstimate(flops=flops, transcendentals=0,
                                      bytes_accessed=bytes_accessed),
    )(x_p, w_t, bias, mid, b_t)

    if (M_pad, N_pad) != (M, N):
        out = out[:M, :N]
    return out


# --------------------------------------------------------------------------------- test
if __name__ == "__main__":
    HI = jax.lax.Precision.HIGHEST

    def make_case(key, batch, in_features, out_features, rank):
        kx, kw, kb, ka, kB = jax.random.split(key, 5)
        lim_w = 1.0 / (in_features ** 0.5)
        lim_b = 1.0 / (rank ** 0.5)
        x = jax.random.normal(kx, (batch, in_features), dtype=jnp.float32)
        w = jax.random.uniform(kw, (out_features, in_features),
                               minval=-lim_w, maxval=lim_w, dtype=jnp.float32)
        b = jax.random.uniform(kb, (out_features,),
                               minval=-lim_w, maxval=lim_w, dtype=jnp.float32)
        A = jax.random.uniform(ka, (rank, in_features),
                               minval=-lim_w, maxval=lim_w, dtype=jnp.float32)
        B = jax.random.uniform(kB, (out_features, rank),
                               minval=-lim_b, maxval=lim_b, dtype=jnp.float32)
        return x, w, b, A, B

    def reference(x, w, b, A, B):
        base = jnp.dot(x, w.T, precision=HI) + b
        lora = jnp.dot(jnp.dot(x, A.T, precision=HI), B.T, precision=HI)
        return base + lora

    key = jax.random.PRNGKey(0)
    k1, k2, k3 = jax.random.split(key, 3)

    # Case 1: toy shapes implied by the module (single-tile grid).
    x, w, b, A, B = make_case(k1, batch=8, in_features=32, out_features=64, rank=4)
    params = lora_prepare(w, b, A, B)
    out = lora_linear_forward(x, params)
    jax.block_until_ready(out)
    ref = reference(x, w, b, A, B)
    assert out.shape == ref.shape
    assert jnp.allclose(out, ref, atol=1e-4, rtol=1e-4), float(jnp.max(jnp.abs(out - ref)))

    # Case 2: non-power-of-two layer (640) -> exact 640 tiles, no padding inflation.
    x, w, b, A, B = make_case(k2, batch=144, in_features=640, out_features=640, rank=8)
    params = lora_prepare(w, b, A, B)
    out = lora_linear_forward(x, params)
    jax.block_until_ready(out)
    ref = reference(x, w, b, A, B)
    assert out.shape == ref.shape
    assert jnp.allclose(out, ref, atol=1e-3, rtol=1e-3), float(jnp.max(jnp.abs(out - ref)))

    # Case 3: exercises the full (i, j, k) tiling, K-accumulation and ragged-M padding.
    x, w, b, A, B = make_case(k3, batch=600, in_features=1536, out_features=1280, rank=16)
    params = lora_prepare(w, b, A, B)
    out = lora_linear_forward(x, params)
    jax.block_until_ready(out)
    ref = reference(x, w, b, A, B)
    assert out.shape == ref.shape
    assert jnp.allclose(out, ref, atol=2e-3, rtol=2e-3), float(jnp.max(jnp.abs(out - ref)))

    print("KERNEL_OK")
</pallas_src>

<mosaic_0001>
module attributes {stable_mosaic.version = 11 : i64} {
  func.func @lora_linear_kernel(%arg0: i32, %arg1: i32, %arg2: i32, %arg3: memref<8x128xf32, #tpu.memory_space<vmem>>, %arg4: memref<128x128xf32, #tpu.memory_space<vmem>>, %arg5: memref<1x128xf32, #tpu.memory_space<vmem>>, %arg6: memref<8x128xf32, #tpu.memory_space<vmem>>, %arg7: memref<128x128xf32, #tpu.memory_space<vmem>>, %arg8: memref<8x128xf32, #tpu.memory_space<vmem>>, %arg9: memref<8x128xf32, #tpu.memory_space<vmem>>) attributes {dimension_semantics = [#tpu.dimension_semantics<parallel>, #tpu.dimension_semantics<parallel>, #tpu.dimension_semantics<arbitrary>], iteration_bounds = array<i64: 1, 1, 1>, scalar_prefetch = 0 : i64, scratch_operands = 1 : i64, tpu.core_type = #tpu.core_type<tc>, window_params = [{transform_indices = @transform_0, window_bounds = array<i64: 8, 128>}, {transform_indices = @transform_1, window_bounds = array<i64: 128, 128>}, {transform_indices = @transform_2, window_bounds = array<i64: 1, 128>}, {transform_indices = @transform_3, window_bounds = array<i64: 8, 128>}, {transform_indices = @transform_4, window_bounds = array<i64: 128, 128>}, {transform_indices = @transform_5, window_bounds = array<i64: 8, 128>}]} {
    %c0_i32 = arith.constant 0 : i32
    %0 = arith.cmpi eq, %arg2, %c0_i32 : i32
    %1 = arith.extui %0 : i1 to i32
    %c0_i32_0 = arith.constant 0 : i32
    %2 = arith.cmpi ne, %1, %c0_i32_0 : i32
    scf.if %2 {
      %c0_10 = arith.constant 0 : index
      %c0_11 = arith.constant 0 : index
      %12 = vector.load %arg5[%c0_10, %c0_11] : memref<1x128xf32, #tpu.memory_space<vmem>>, vector<1x128xf32>
      %13 = vector.shape_cast %12 : vector<1x128xf32> to vector<1x128xf32>
      %14 = vector.broadcast %13 : vector<1x128xf32> to vector<8x128xf32>
      %c0_12 = arith.constant 0 : index
      %c0_13 = arith.constant 0 : index
      %15 = vector.load %arg9[%c0_12, %c0_13] : memref<8x128xf32, #tpu.memory_space<vmem>>, vector<8x128xf32>
      tpu.vector_store %arg9[%c0_12, %c0_13], %14 {strides = array<i32>} : memref<8x128xf32, #tpu.memory_space<vmem>>, vector<8x128xf32>,
    } else {
    }
    %c0 = arith.constant 0 : index
    %c0_1 = arith.constant 0 : index
    %3 = vector.load %arg9[%c0, %c0_1] : memref<8x128xf32, #tpu.memory_space<vmem>>, vector<8x128xf32>
    %c0_2 = arith.constant 0 : index
    %c0_3 = arith.constant 0 : index
    %4 = vector.load %arg3[%c0_2, %c0_3] : memref<8x128xf32, #tpu.memory_space<vmem>>, vector<8x128xf32>
    %c0_4 = arith.constant 0 : index
    %c0_5 = arith.constant 0 : index
    %5 = vector.load %arg4[%c0_4, %c0_5] : memref<128x128xf32, #tpu.memory_space<vmem>>, vector<128x128xf32>
    %cst = arith.constant dense<0.000000e+00> : vector<8x128xf32>
    %6 = tpu.matmul %4, %5, %cst {dimension_numbers = #tpu.dot_dimension_numbers<[1], [0], [0], [1], [0, 0, 1, 1], [], []>} : vector<8x128xf32>, vector<128x128xf32>, vector<8x128xf32> -> vector<8x128xf32>
    %7 = arith.addf %3, %6 : vector<8x128xf32>
    %c0_6 = arith.constant 0 : index
    %c0_7 = arith.constant 0 : index
    %8 = vector.load %arg9[%c0_6, %c0_7] : memref<8x128xf32, #tpu.memory_space<vmem>>, vector<8x128xf32>
    tpu.vector_store %arg9[%c0_6, %c0_7], %7 {strides = array<i32>} : memref<8x128xf32, #tpu.memory_space<vmem>>, vector<8x128xf32>,
    %c0_i32_8 = arith.constant 0 : i32
    %9 = arith.cmpi eq, %arg2, %c0_i32_8 : i32
    %10 = arith.extui %9 : i1 to i32
    %c0_i32_9 = arith.constant 0 : i32
    %11 = arith.cmpi ne, %10, %c0_i32_9 : i32
    scf.if %11 {
      %c0_10 = arith.constant 0 : index
      %c0_11 = arith.constant 0 : index
      %12 = vector.load %arg6[%c0_10, %c0_11] : memref<8x128xf32, #tpu.memory_space<vmem>>, vector<8x128xf32>
      %c0_12 = arith.constant 0 : index
      %c0_13 = arith.constant 0 : index
      %13 = vector.load %arg7[%c0_12, %c0_13] : memref<128x128xf32, #tpu.memory_space<vmem>>, vector<128x128xf32>
      %cst_14 = arith.constant dense<0.000000e+00> : vector<8x128xf32>
      %14 = tpu.matmul %12, %13, %cst_14 {dimension_numbers = #tpu.dot_dimension_numbers<[1], [0], [0], [1], [0, 0, 1, 1], [], []>} : vector<8x128xf32>, vector<128x128xf32>, vector<8x128xf32> -> vector<8x128xf32>
      %c0_15 = arith.constant 0 : index
      %c0_16 = arith.constant 0 : index
      %15 = vector.load %arg9[%c0_15, %c0_16] : memref<8x128xf32, #tpu.memory_space<vmem>>, vector<8x128xf32>
      %16 = arith.addf %15, %14 : vector<8x128xf32>
      %c0_17 = arith.constant 0 : index
      %c0_18 = arith.constant 0 : index
      %17 = vector.load %arg8[%c0_17, %c0_18] : memref<8x128xf32, #tpu.memory_space<vmem>>, vector<8x128xf32>
      tpu.vector_store %arg8[%c0_17, %c0_18], %16 {strides = array<i32>} : memref<8x128xf32, #tpu.memory_space<vmem>>, vector<8x128xf32>,
    } else {
    }
    return
  }
  func.func @transform_0(%arg0: i32, %arg1: i32, %arg2: i32) -> (i32, i32) {
    %c0_i32 = arith.constant 0 : i32
    return %arg0, %arg2 : i32, i32
  }
  func.func @transform_1(%arg0: i32, %arg1: i32, %arg2: i32) -> (i32, i32) {
    %c0_i32 = arith.constant 0 : i32
    return %arg2, %arg1 : i32, i32
  }
  func.func @transform_2(%arg0: i32, %arg1: i32, %arg2: i32) -> (i32, i32) {
    %c0_i32 = arith.constant 0 : i32
    %c0_i32_0 = arith.constant 0 : i32
    return %c0_i32, %arg1 : i32, i32
  }
  func.func @transform_3(%arg0: i32, %arg1: i32, %arg2: i32) -> (i32, i32) {
    %c0_i32 = arith.constant 0 : i32
    %c0_i32_0 = arith.constant 0 : i32
    return %arg0, %c0_i32 : i32, i32
  }
  func.func @transform_4(%arg0: i32, %arg1: i32, %arg2: i32) -> (i32, i32) {
    %c0_i32 = arith.constant 0 : i32
    %c0_i32_0 = arith.constant 0 : i32
    return %c0_i32, %arg1 : i32, i32
  }
  func.func @transform_5(%arg0: i32, %arg1: i32, %arg2: i32) -> (i32, i32) {
    %c0_i32 = arith.constant 0 : i32
    return %arg0, %arg1 : i32, i32
  }
}

</mosaic_0001>

<llo_original>
// kernel: tpu_custom_call.1
$region0: #{tpu_custom_call.1}
  #allocation0 [shape = 'u32[]', space=smem, size = 0x4, offset = 0x4, fixed_abs, tag = 'smem constant byte address 0x4 - core index']
  #allocation1 [shape = 'u32[144,128]{1,0:T(1,128)}', space=vmem, size = 0x12000, scoped, tag = 'internal scratch']
  #allocation2 [shape = 'f32[8,128]{1,0:T(8,128)}', space=vmem, size = 0x1000, scoped, tag = 'scratch operand']
  %s0 = inlined_call_operand.hbm [shape: f32[8,128], index: 0, kind: input, shape index: {}]
  %s1 = inlined_call_operand.hbm [shape: f32[128,128], index: 1, kind: input, shape index: {}]
  %s2 = inlined_call_operand.vmem [shape: f32[1,128], index: 2, kind: input, shape index: {}]
  %s3 = inlined_call_operand.hbm [shape: f32[8,128], index: 3, kind: input, shape index: {}]
  %s4 = inlined_call_operand.hbm [shape: f32[128,128], index: 4, kind: input, shape index: {}]
  %s5 = inlined_call_operand.hbm [shape: f32[8,128], index: 5, kind: output, shape index: {}]
  %s6 = sld [smem:[#allocation0]]
  $region54: #{tpu_custom_call.1} parent=0
    _
  %s8 = ssub.s32 1, %s6
  %s9 = scalar_select 0, %s8, %s6
  $region1: #{tpu_custom_call.1} parent=0
    #allocation3 [shape = 'u8[4096]{0}', space=vmem, size = 0x1000, scoped, tag = 'input window, operand 0, single buffered']
    #allocation4 [shape = 's32[1]{0}', space=sflag, size = 0x4, scoped, tag = 'scoped memory for tpu_custom_call.1']
    #allocation5 [shape = 's32[1]{0}', space=sflag, size = 0x4, scoped, tag = 'scoped memory for tpu_custom_call.1']
    #allocation6 [shape = 'u8[65536]{0}', space=vmem, size = 0x10000, scoped, tag = 'input window, operand 1, single buffered']
    #allocation7 [shape = 's32[1]{0}', space=sflag, size = 0x4, scoped, tag = 'scoped memory for tpu_custom_call.1']
    #allocation8 [shape = 'u8[4096]{0}', space=vmem, size = 0x1000, scoped, tag = 'input window, operand 3, single buffered']
    #allocation9 [shape = 'u8[65536]{0}', space=vmem, size = 0x10000, scoped, tag = 'input window, operand 4, single buffered']
    #allocation10 [shape = 's32[1]{0}', space=sflag, size = 0x4, scoped, tag = 'scoped memory for tpu_custom_call.1']
    #allocation11 [shape = 'u8[4096]{0}', space=vmem, size = 0x1000, scoped, tag = 'output window, operand 0, single buffered']
    %10 = vsyncpa [#allocation4], 0
    %11 = vsyncpa [#allocation7], 0
    %12 = vsyncpa [#allocation10], 0
    %13 = vsyncpa [#allocation5], 0
    // Predicated region
    $region2: #{tpu_custom_call.1} parent=1 // pred_check
      _
    $region3: #{tpu_custom_call.1} parent=1 // pred_check_branch
      %15 = sbr.rel (0) target = $region5
    $region4: #{tpu_custom_call.1} parent=1 // pred_region
      %s17 = ssub.s32 128, 128
      %18 = vsyncadd [#allocation4], %s17
      %s20 = sshll.u32 [#allocation3], 4
      %s21 = int_to_ptr.vmem [resolvable:$true] %s20
      %23 = dma.hbm_to_vmem [thread:$0]  %s0, 128, %s21, [#allocation4]
    $region5: #{tpu_custom_call.1} parent=1 // pred_fallthru
      _
    // Predicated region
    $region6: #{tpu_custom_call.1} parent=1 // pred_check
      _
    $region7: #{tpu_custom_call.1} parent=1 // pred_check_branch
      %25 = sbr.rel (0) target = $region9
    $region8: #{tpu_custom_call.1} parent=1 // pred_region
      %s27 = ssub.s32 2048, 2048
      %28 = vsyncadd [#allocation7], %s27
      %s29 = sshll.u32 [#allocation6], 4
      %s30 = int_to_ptr.vmem [resolvable:$true] %s29
      %35 = dma.hbm_to_vmem [thread:$0]  %s1, 2048, %s30, [#allocation7], 128, 128, 8
    $region9: #{tpu_custom_call.1} parent=1 // pred_fallthru
      _
    // Predicated region
    $region10: #{tpu_custom_call.1} parent=1 // pred_check
      _
    $region11: #{tpu_custom_call.1} parent=1 // pred_check_branch
      %37 = sbr.rel (0) target = $region13
    $region12: #{tpu_custom_call.1} parent=1 // pred_region
      _
    $region13: #{tpu_custom_call.1} parent=1 // pred_fallthru
      _
    // Predicated region
    $region14: #{tpu_custom_call.1} parent=1 // pred_check
      _
    $region15: #{tpu_custom_call.1} parent=1 // pred_check_branch
      %39 = sbr.rel (0) target = $region17
    $region16: #{tpu_custom_call.1} parent=1 // pred_region
      %s41 = ssub.s32 128, 128
      %42 = vsyncadd [#allocation7], %s41
      %s44 = sshll.u32 [#allocation8], 4
      %s45 = int_to_ptr.vmem [resolvable:$true] %s44
      %47 = dma.hbm_to_vmem [thread:$0]  %s3, 128, %s45, [#allocation7]
    $region17: #{tpu_custom_call.1} parent=1 // pred_fallthru
      _
    // Predicated region
    $region18: #{tpu_custom_call.1} parent=1 // pred_check
      _
    $region19: #{tpu_custom_call.1} parent=1 // pred_check_branch
      %49 = sbr.rel (0) target = $region21
    $region20: #{tpu_custom_call.1} parent=1 // pred_region
      %s51 = ssub.s32 2048, 2048
      %52 = vsyncadd [#allocation10], %s51
      %s53 = sshll.u32 [#allocation9], 4
      %s54 = int_to_ptr.vmem [resolvable:$true] %s53
      %59 = dma.hbm_to_vmem [thread:$0]  %s4, 2048, %s54, [#allocation10], 128, 128, 8
    $region21: #{tpu_custom_call.1} parent=1 // pred_fallthru
      _
    // Predicated region
    $region22: #{tpu_custom_call.1} parent=1 // pred_check
      _
    $region23: #{tpu_custom_call.1} parent=1 // pred_check_branch
      %61 = sbr.rel (0) target = $region25
    $region24: #{tpu_custom_call.1} parent=1 // pred_region
      %62 = dma.done [#allocation4], 128
    $region25: #{tpu_custom_call.1} parent=1 // pred_fallthru
      _
    // Predicated region
    $region26: #{tpu_custom_call.1} parent=1 // pred_check
      _
    $region27: #{tpu_custom_call.1} parent=1 // pred_check_branch
      %64 = sbr.rel (0) target = $region29
    $region28: #{tpu_custom_call.1} parent=1 // pred_region
      %65 = dma.done [#allocation7], 2048
    $region29: #{tpu_custom_call.1} parent=1 // pred_fallthru
      _
    // Predicated region
    $region30: #{tpu_custom_call.1} parent=1 // pred_check
      _
    $region31: #{tpu_custom_call.1} parent=1 // pred_check_branch
      %67 = sbr.rel (0) target = $region33
    $region32: #{tpu_custom_call.1} parent=1 // pred_region
      %68 = dma.done [#allocation7], 128
    $region33: #{tpu_custom_call.1} parent=1 // pred_fallthru
      _
    // Predicated region
    $region34: #{tpu_custom_call.1} parent=1 // pred_check
      _
    $region35: #{tpu_custom_call.1} parent=1 // pred_check_branch
      %70 = sbr.rel (0) target = $region37
    $region36: #{tpu_custom_call.1} parent=1 // pred_region
      %71 = dma.done [#allocation10], 2048
    $region37: #{tpu_custom_call.1} parent=1 // pred_fallthru
      _
    %p72 = scmp.eq.s32.totalorder 0, 0
    // Predicated region
    $region38: #{tpu_custom_call.1} parent=1 // pred_check
      %p73 = pneg %p72
    $region39: #{tpu_custom_call.1} parent=1 // pred_check_branch
      %75 = sbr.rel (%p73) target = $region41
    $region40: #{tpu_custom_call.1} parent=1 // pred_region
      %v76 = vld [vmem:[%s2] sm:$0x1]
      %v78 = vlaneseq
      %v79 = vshrl.u32 %v78, 7
      %v80 = vsub.s32 0, %v79
      %v81 = vrot.slane %v76, %v80
      %83 = vst [vmem:[#allocation2] sm:$0xff] %v81
    $region41: #{tpu_custom_call.1} parent=1 // pred_fallthru
      _
    %v84 = vld [vmem:[#allocation2] sm:$0xff]
    %v85 = vld [vmem:[#allocation3] sm:$0xff]
    %v86 = vld [vmem:[#allocation6] sm:$0xff]
    %v87 = vld [vmem:[#allocation6 + $0x8] sm:$0xff]
    %v88 = vld [vmem:[#allocation6 + $0x10] sm:$0xff]
    %v89 = vld [vmem:[#allocation6 + $0x18] sm:$0xff]
    %v90 = vld [vmem:[#allocation6 + $0x20] sm:$0xff]
    %v91 = vld [vmem:[#allocation6 + $0x28] sm:$0xff]
    %v92 = vld [vmem:[#allocation6 + $0x30] sm:$0xff]
    %v93 = vld [vmem:[#allocation6 + $0x38] sm:$0xff]
    %v94 = vld [vmem:[#allocation6 + $0x40] sm:$0xff]
    %v95 = vld [vmem:[#allocation6 + $0x48] sm:$0xff]
    %v96 = vld [vmem:[#allocation6 + $0x50] sm:$0xff]
    %v97 = vld [vmem:[#allocation6 + $0x58] sm:$0xff]
    %v98 = vld [vmem:[#allocation6 + $0x60] sm:$0xff]
    %v99 = vld [vmem:[#allocation6 + $0x68] sm:$0xff]
    %v100 = vld [vmem:[#allocation6 + $0x70] sm:$0xff]
    %v101 = vld [vmem:[#allocation6 + $0x78] sm:$0xff]
    %102 = vmatprep.subr.mxu0 0.0
    %103 = vmatpush1.msra.mxu0 %v101
    %104 = vmatprep.subr.mxu0 0.0
    %105 = vmatpush1.msra.mxu0 %v100
    %106 = vmatprep.subr.mxu0 0.0
    %107 = vmatpush1.msra.mxu0 %v99
    %108 = vmatprep.subr.mxu0 0.0
    %109 = vmatpush1.msra.mxu0 %v98
    %110 = vmatprep.subr.mxu0 0.0
    %111 = vmatpush1.msra.mxu0 %v97
    %112 = vmatprep.subr.mxu0 0.0
    %113 = vmatpush1.msra.mxu0 %v96
    %114 = vmatprep.subr.mxu0 0.0
    %115 = vmatpush1.msra.mxu0 %v95
    %116 = vmatprep.subr.mxu0 0.0
    %117 = vmatpush1.msra.mxu0 %v94
    %118 = vmatprep.subr.mxu0 0.0
    %119 = vmatpush1.msra.mxu0 %v93
    %120 = vmatprep.subr.mxu0 0.0
    %121 = vmatpush1.msra.mxu0 %v92
    %122 = vmatprep.subr.mxu0 0.0
    %123 = vmatpush1.msra.mxu0 %v91
    %124 = vmatprep.subr.mxu0 0.0
    %125 = vmatpush1.msra.mxu0 %v90
    %126 = vmatprep.subr.mxu0 0.0
    %127 = vmatpush1.msra.mxu0 %v89
    %128 = vmatprep.subr.mxu0 0.0
    %129 = vmatpush1.msra.mxu0 %v88
    %130 = vmatprep.subr.mxu0 0.0
    %131 = vmatpush1.msra.mxu0 %v87
    %132 = vmatprep.subr.mxu0 0.0
    %133 = vmatpush1.msra.mxu0 %v86
    %134 = vmatprep.subr.mxu0 0.0
    %135 = vmatpush2.msra.mxu0 0.0
    %136 = vmatprep.subr.mxu0 0.0
    %137 = vmatpush2.msra.mxu0 0.0
    %138 = vmatprep.subr.mxu0 0.0
    %139 = vmatpush2.msra.mxu0 0.0
    %140 = vmatprep.subr.mxu0 0.0
    %141 = vmatpush2.msra.mxu0 0.0
    %142 = vmatprep.subr.mxu0 0.0
    %143 = vmatpush2.msra.mxu0 0.0
    %144 = vmatprep.subr.mxu0 0.0
    %145 = vmatpush2.msra.mxu0 0.0
    %146 = vmatprep.subr.mxu0 0.0
    %147 = vmatpush2.msra.mxu0 0.0
    %148 = vmatprep.subr.mxu0 0.0
    %149 = vmatpush2.msra.mxu0 0.0
    %150 = vmatprep.subr.mxu0 0.0
    %151 = vmatpush2.msra.mxu0 0.0
    %152 = vmatprep.subr.mxu0 0.0
    %153 = vmatpush2.msra.mxu0 0.0
    %154 = vmatprep.subr.mxu0 0.0
    %155 = vmatpush2.msra.mxu0 0.0
    %156 = vmatprep.subr.mxu0 0.0
    %157 = vmatpush2.msra.mxu0 0.0
    %158 = vmatprep.subr.mxu0 0.0
    %159 = vmatpush2.msra.mxu0 0.0
    %160 = vmatprep.subr.mxu0 0.0
    %161 = vmatpush2.msra.mxu0 0.0
    %162 = vmatprep.subr.mxu0 0.0
    %163 = vmatpush2.msra.mxu0 0.0
    %164 = vmatprep.subr.mxu0 0.0
    %165 = vmatpush2.msra.mxu0 0.0
    %166 = vmatprep.mubr.f32.mxu0 0.0
    %167 = vmatmul.mubr.f32.gmra.mxu0 %v85
    %v168 = vpop.f32.mrf.mxu0
    %v169 = vadd.f32 0.0, %v168
    %v170 = vpop.f32.mrf.mxu0
    %171 = vdwg.mxu0
    %v172 = vadd.f32 %v84, %v169
    %173 = vst [vmem:[#allocation2] sm:$0xff] %v172
    // Predicated region
    $region42: #{tpu_custom_call.1} parent=1 // pred_check
      %p174 = pneg %p72
    $region43: #{tpu_custom_call.1} parent=1 // pred_check_branch
      %176 = sbr.rel (%p174) target = $region45
    $region44: #{tpu_custom_call.1} parent=1 // pred_region
      %v177 = vld [vmem:[#allocation8] sm:$0xff]
      %v178 = vld [vmem:[#allocation9] sm:$0xff]
      %v179 = vld [vmem:[#allocation9 + $0x8] sm:$0xff]
      %v180 = vld [vmem:[#allocation9 + $0x10] sm:$0xff]
      %v181 = vld [vmem:[#allocation9 + $0x18] sm:$0xff]
      %v182 = vld [vmem:[#allocation9 + $0x20] sm:$0xff]
      %v183 = vld [vmem:[#allocation9 + $0x28] sm:$0xff]
      %v184 = vld [vmem:[#allocation9 + $0x30] sm:$0xff]
      %v185 = vld [vmem:[#allocation9 + $0x38] sm:$0xff]
      %v186 = vld [vmem:[#allocation9 + $0x40] sm:$0xff]
      %v187 = vld [vmem:[#allocation9 + $0x48] sm:$0xff]
      %v188 = vld [vmem:[#allocation9 + $0x50] sm:$0xff]
      %v189 = vld [vmem:[#allocation9 + $0x58] sm:$0xff]
      %v190 = vld [vmem:[#allocation9 + $0x60] sm:$0xff]
      %v191 = vld [vmem:[#allocation9 + $0x68] sm:$0xff]
      %v192 = vld [vmem:[#allocation9 + $0x70] sm:$0xff]
      %v193 = vld [vmem:[#allocation9 + $0x78] sm:$0xff]
      %194 = vmatprep.subr.mxu0 0.0
      %195 = vmatpush1.msra.mxu0 %v193
      %196 = vmatprep.subr.mxu0 0.0
      %197 = vmatpush1.msra.mxu0 %v192
      %198 = vmatprep.subr.mxu0 0.0
      %199 = vmatpush1.msra.mxu0 %v191
      %200 = vmatprep.subr.mxu0 0.0
      %201 = vmatpush1.msra.mxu0 %v190
      %202 = vmatprep.subr.mxu0 0.0
      %203 = vmatpush1.msra.mxu0 %v189
      %204 = vmatprep.subr.mxu0 0.0
      %205 = vmatpush1.msra.mxu0 %v188
      %206 = vmatprep.subr.mxu0 0.0
      %207 = vmatpush1.msra.mxu0 %v187
      %208 = vmatprep.subr.mxu0 0.0
      %209 = vmatpush1.msra.mxu0 %v186
      %210 = vmatprep.subr.mxu0 0.0
      %211 = vmatpush1.msra.mxu0 %v185
      %212 = vmatprep.subr.mxu0 0.0
      %213 = vmatpush1.msra.mxu0 %v184
      %214 = vmatprep.subr.mxu0 0.0
      %215 = vmatpush1.msra.mxu0 %v183
      %216 = vmatprep.subr.mxu0 0.0
      %217 = vmatpush1.msra.mxu0 %v182
      %218 = vmatprep.subr.mxu0 0.0
      %219 = vmatpush1.msra.mxu0 %v181
      %220 = vmatprep.subr.mxu0 0.0
      %221 = vmatpush1.msra.mxu0 %v180
      %222 = vmatprep.subr.mxu0 0.0
      %223 = vmatpush1.msra.mxu0 %v179
      %224 = vmatprep.subr.mxu0 0.0
      %225 = vmatpush1.msra.mxu0 %v178
      %226 = vmatprep.subr.mxu0 0.0
      %227 = vmatpush2.msra.mxu0 0.0
      %228 = vmatprep.subr.mxu0 0.0
      %229 = vmatpush2.msra.mxu0 0.0
      %230 = vmatprep.subr.mxu0 0.0
      %231 = vmatpush2.msra.mxu0 0.0
      %232 = vmatprep.subr.mxu0 0.0
      %233 = vmatpush2.msra.mxu0 0.0
      %234 = vmatprep.subr.mxu0 0.0
      %235 = vmatpush2.msra.mxu0 0.0
      %236 = vmatprep.subr.mxu0 0.0
      %237 = vmatpush2.msra.mxu0 0.0
      %238 = vmatprep.subr.mxu0 0.0
      %239 = vmatpush2.msra.mxu0 0.0
      %240 = vmatprep.subr.mxu0 0.0
      %241 = vmatpush2.msra.mxu0 0.0
      %242 = vmatprep.subr.mxu0 0.0
      %243 = vmatpush2.msra.mxu0 0.0
      %244 = vmatprep.subr.mxu0 0.0
      %245 = vmatpush2.msra.mxu0 0.0
      %246 = vmatprep.subr.mxu0 0.0
      %247 = vmatpush2.msra.mxu0 0.0
      %248 = vmatprep.subr.mxu0 0.0
      %249 = vmatpush2.msra.mxu0 0.0
      %250 = vmatprep.subr.mxu0 0.0
      %251 = vmatpush2.msra.mxu0 0.0
      %252 = vmatprep.subr.mxu0 0.0
      %253 = vmatpush2.msra.mxu0 0.0
      %254 = vmatprep.subr.mxu0 0.0
      %255 = vmatpush2.msra.mxu0 0.0
      %256 = vmatprep.subr.mxu0 0.0
      %257 = vmatpush2.msra.mxu0 0.0
      %258 = vmatprep.mubr.f32.mxu0 0.0
      %259 = vmatmul.mubr.f32.gmra.mxu0 %v177
      %v260 = vpop.f32.mrf.mxu0
      %v261 = vadd.f32 0.0, %v260
      %v262 = vpop.f32.mrf.mxu0
      %263 = vdwg.mxu0
      %v264 = vld [vmem:[#allocation2] sm:$0xff]
      %v265 = vadd.f32 %v264, %v261
      %266 = vst [vmem:[#allocation11] sm:$0xff] %v265
    $region45: #{tpu_custom_call.1} parent=1 // pred_fallthru
      _
    // Predicated region
    $region46: #{tpu_custom_call.1} parent=1 // pred_check
      _
    $region47: #{tpu_custom_call.1} parent=1 // pred_check_branch
      %268 = sbr.rel (0) target = $region49
    $region48: #{tpu_custom_call.1} parent=1 // pred_region
      %s270 = ssub.s32 128, 128
      %271 = vsyncadd [#allocation5], %s270
      %s273 = sshll.u32 [#allocation11], 4
      %s274 = int_to_ptr.vmem [resolvable:$true] %s273
      %276 = dma.vmem_to_hbm [thread:$0]  %s274, 128, %s5, [#allocation5]
    $region49: #{tpu_custom_call.1} parent=1 // pred_fallthru
      _
    // Predicated region
    $region50: #{tpu_custom_call.1} parent=1 // pred_check
      _
    $region51: #{tpu_custom_call.1} parent=1 // pred_check_branch
      %278 = sbr.rel (0) target = $region53
    $region52: #{tpu_custom_call.1} parent=1 // pred_region
      %279 = dma.done [#allocation5], 128
    $region53: #{tpu_custom_call.1} parent=1 // pred_fallthru
      _
    %280 = vsyncpa [#allocation4], 1
    %281 = vsyncpa [#allocation7], 1
    %282 = vsyncpa [#allocation10], 1
    %283 = vsyncpa [#allocation5], 1

</llo_original>
